<compile_context>
chip_gen: v5e
topology: v5e:2x2
jax: 0.10.0
libtpu: 0.0.40
codegen_flags: <defaults>
</compile_context>

<pallas_src>
import functools

import jax
import jax.numpy as jnp
from jax.experimental import pallas as pl
from jax.experimental.pallas import tpu as pltpu


def _round_up(x: int, m: int) -> int:
    return (x + m - 1) // m * m


def _sage_layer_kernel(a_ref, hsrc_ref, hself_ref, ws_ref, wn_ref, b_ref,
                       o_ref, acc_ref, *, relu: bool):
    """One WeightedSAGEConv layer, tiled over (row blocks i, source blocks k).

    a_ref     : [TM, TK]    bf16 block of degree-normalized adjacency
    hsrc_ref  : [TK, Fin]   bf16 node features (contraction operand)
    hself_ref : [TM, Fin]   bf16 node features (self term for this row block)
    ws_ref    : [Fin, FoutP] bf16 self weight      (Fout padded to 128 lanes)
    wn_ref    : [Fin, FoutP] bf16 neighbor weight
    b_ref     : [1,  FoutP]  f32 bias
    o_ref     : [TM, FoutP]  f32 output block (lane-dense)
    acc_ref   : [TM, Fin]    f32 scratch accumulator for A_norm @ H
    """
    k = pl.program_id(1)

    @pl.when(k == 0)
    def _():
        acc_ref[...] = jnp.zeros_like(acc_ref)

    # Mean aggregation: accumulate the normalized-adjacency matmul over k tiles.
    acc_ref[...] += jnp.dot(a_ref[...], hsrc_ref[...],
                            preferred_element_type=jnp.float32)

    @pl.when(k == pl.num_programs(1) - 1)
    def _():
        h_n = acc_ref[...].astype(jnp.bfloat16)
        # Linear(cat([h, h_N])) == h @ Ws + h_N @ Wn + b   (f32 epilogue)
        out = (jnp.dot(hself_ref[...], ws_ref[...],
                       preferred_element_type=jnp.float32)
               + jnp.dot(h_n, wn_ref[...],
                         preferred_element_type=jnp.float32)
               + b_ref[...])
        if relu:
            out = jnp.maximum(out, 0.0)
        o_ref[...] = out.astype(o_ref.dtype)


def sage_layer(a_norm, h, weight, bias, *, relu: bool, tm: int = 256, tk: int = 512):
    """One WeightedSAGEConv layer.

    a_norm : [N, N]  degree-normalized adjacency (any float dtype; cast to bf16)
    h      : [N, Fin] node features
    weight : [Fout, 2*Fin] PyTorch nn.Linear weight
    bias   : [Fout]
    """
    n = a_norm.shape[0]
    fin = h.shape[1]
    fout = weight.shape[0]
    fout_p = _round_up(fout, 128)            # lane-dense output stores

    tm = min(tm, _round_up(n, 8))
    tk = min(tk, _round_up(n, 128))
    n_rows = _round_up(n, tm)
    n_cols = _round_up(n, tk)

    h_bf = h.astype(jnp.bfloat16)
    a_p = jnp.pad(a_norm.astype(jnp.bfloat16),
                  ((0, n_rows - n), (0, n_cols - n)))
    h_src = jnp.pad(h_bf, ((0, n_cols - n), (0, 0)))
    h_self = jnp.pad(h_bf, ((0, n_rows - n), (0, 0)))

    w_bf = weight.astype(jnp.bfloat16)
    w_self = jnp.pad(w_bf[:, :fin].T, ((0, 0), (0, fout_p - fout)))
    w_neigh = jnp.pad(w_bf[:, fin:].T, ((0, 0), (0, fout_p - fout)))
    b_p = jnp.pad(bias.reshape(1, fout).astype(jnp.float32),
                  ((0, 0), (0, fout_p - fout)))

    grid = (n_rows // tm, n_cols // tk)

    cost = pl.CostEstimate(
        flops=2 * n_rows * n_cols * fin + 4 * n_rows * fin * fout_p,
        transcendentals=0,
        bytes_accessed=(a_p.size * 2 + h_src.size * 2 + h_self.size * 2
                        + (w_self.size + w_neigh.size) * 2
                        + b_p.size * 4 + n_rows * fout_p * 4),
    )

    out = pl.pallas_call(
        functools.partial(_sage_layer_kernel, relu=relu),
        out_shape=jax.ShapeDtypeStruct((n_rows, fout_p), jnp.float32),
        grid=grid,
        in_specs=[
            pl.BlockSpec((tm, tk), lambda i, k: (i, k)),        # adjacency tile
            pl.BlockSpec((tk, fin), lambda i, k: (k, 0)),       # source features
            pl.BlockSpec((tm, fin), lambda i, k: (i, 0)),       # self features
            pl.BlockSpec((fin, fout_p), lambda i, k: (0, 0)),   # Ws (resident)
            pl.BlockSpec((fin, fout_p), lambda i, k: (0, 0)),   # Wn (resident)
            pl.BlockSpec((1, fout_p), lambda i, k: (0, 0)),     # bias (resident)
        ],
        out_specs=pl.BlockSpec((tm, fout_p), lambda i, k: (i, 0)),
        scratch_shapes=[pltpu.VMEM((tm, fin), jnp.float32)],
        compiler_params=pltpu.CompilerParams(
            dimension_semantics=("parallel", "arbitrary"),
            vmem_limit_bytes=48 * 1024 * 1024,
        ),
        cost_estimate=cost,
    )(a_p, h_src, h_self, w_self, w_neigh, b_p)

    return out[:n, :fout]


def model_forward(adj, in_feat, params):
    """Model.forward: two WeightedSAGEConv layers with ReLU in between.

    Edge weights are all ones (as in the PyTorch forward), baked into `adj`.
    1/in_degree is folded into the adjacency once and reused by both layers.
    """
    deg = jnp.sum(adj, axis=1, keepdims=True)                   # in-degree counts
    inv_deg = jnp.where(deg > 0, 1.0 / jnp.maximum(deg, 1.0), 0.0)
    a_norm = (adj * inv_deg).astype(jnp.bfloat16)               # cast once, reuse
    h = sage_layer(a_norm, in_feat, params["w1"], params["b1"], relu=True)
    h = sage_layer(a_norm, h, params["w2"], params["b2"], relu=False)
    return h


def _reference_forward(adj, in_feat, params):
    """Pure-JAX reference mirroring the kernel's bf16/f32 precision choices."""
    deg = jnp.sum(adj, axis=1, keepdims=True)
    inv_deg = jnp.where(deg > 0, 1.0 / jnp.maximum(deg, 1.0), 0.0)
    a_norm = (adj * inv_deg).astype(jnp.bfloat16)

    def layer(h, w, b, relu):
        fin = h.shape[1]
        h_bf = h.astype(jnp.bfloat16)
        h_n = jnp.dot(a_norm, h_bf,
                      preferred_element_type=jnp.float32).astype(jnp.bfloat16)
        w_bf = w.astype(jnp.bfloat16)
        out = (jnp.dot(h_bf, w_bf[:, :fin].T, preferred_element_type=jnp.float32)
               + jnp.dot(h_n, w_bf[:, fin:].T, preferred_element_type=jnp.float32)
               + b.astype(jnp.float32))
        return jnp.maximum(out, 0.0) if relu else out

    h = layer(in_feat, params["w1"], params["b1"], True)
    return layer(h, params["w2"], params["b2"], False)


if __name__ == "__main__":
    # small synthetic graph standing in for the Cora dataset
    N = 32            # nodes
    IN_FEATS = 16
    H_FEATS = 32
    NUM_CLASSES = 8

    key = jax.random.PRNGKey(0)
    k_adj, k_x, k_w1, k_b1, k_w2, k_b2 = jax.random.split(key, 6)

    # random directed graph, edge weight 1.0 (matches torch.ones(num_edges, 1))
    adj = (jax.random.uniform(k_adj, (N, N)) < 0.25).astype(jnp.float32)
    x = jax.random.normal(k_x, (N, IN_FEATS), dtype=jnp.float32)

    # deterministic parameter init (PyTorch Linear layout: (out, 2*in))
    params = {
        "w1": jax.random.normal(k_w1, (H_FEATS, 2 * IN_FEATS), jnp.float32) * 0.1,
        "b1": jax.random.normal(k_b1, (H_FEATS,), jnp.float32) * 0.1,
        "w2": jax.random.normal(k_w2, (NUM_CLASSES, 2 * H_FEATS), jnp.float32) * 0.1,
        "b2": jax.random.normal(k_b2, (NUM_CLASSES,), jnp.float32) * 0.1,
    }

    out = jax.block_until_ready(model_forward(adj, x, params))
    ref = jax.block_until_ready(_reference_forward(adj, x, params))

    assert out.shape == (N, NUM_CLASSES)
    assert jnp.allclose(out, ref, atol=2e-2, rtol=2e-2), \
        f"max abs err {jnp.max(jnp.abs(out - ref))}"
    print("KERNEL_OK")
</pallas_src>

<mosaic_0001>
module attributes {stable_mosaic.version = 11 : i64} {
  func.func @_sage_layer_kernel(%arg0: i32, %arg1: i32, %arg2: memref<32x128xbf16, #tpu.memory_space<vmem>>, %arg3: memref<128x16xbf16, #tpu.memory_space<vmem>>, %arg4: memref<32x16xbf16, #tpu.memory_space<vmem>>, %arg5: memref<16x128xbf16, #tpu.memory_space<vmem>>, %arg6: memref<16x128xbf16, #tpu.memory_space<vmem>>, %arg7: memref<1x128xf32, #tpu.memory_space<vmem>>, %arg8: memref<32x128xf32, #tpu.memory_space<vmem>>, %arg9: memref<32x16xf32, #tpu.memory_space<vmem>>) attributes {dimension_semantics = [#tpu.dimension_semantics<parallel>, #tpu.dimension_semantics<arbitrary>], iteration_bounds = array<i64: 1, 1>, scalar_prefetch = 0 : i64, scratch_operands = 1 : i64, tpu.core_type = #tpu.core_type<tc>, window_params = [{transform_indices = @transform_0, window_bounds = array<i64: 32, 128>}, {transform_indices = @transform_1, window_bounds = array<i64: 128, 16>}, {transform_indices = @transform_2, window_bounds = array<i64: 32, 16>}, {pipeline_mode = #tpu.pipeline_mode<synchronous>, transform_indices = @transform_3, window_bounds = array<i64: 16, 128>}, {pipeline_mode = #tpu.pipeline_mode<synchronous>, transform_indices = @transform_4, window_bounds = array<i64: 16, 128>}, {pipeline_mode = #tpu.pipeline_mode<synchronous>, transform_indices = @transform_5, window_bounds = array<i64: 1, 128>}, {transform_indices = @transform_6, window_bounds = array<i64: 32, 128>}]} {
    %c0_i32 = arith.constant 0 : i32
    %0 = arith.cmpi eq, %arg1, %c0_i32 : i32
    %1 = arith.extui %0 : i1 to i32
    %c0_i32_0 = arith.constant 0 : i32
    %2 = arith.cmpi ne, %1, %c0_i32_0 : i32
    scf.if %2 {
      %cst_10 = arith.constant 0.000000e+00 : f32
      %12 = vector.broadcast %cst_10 : f32 to vector<32x16xf32>
      %c0_11 = arith.constant 0 : index
      %c0_12 = arith.constant 0 : index
      %13 = vector.load %arg9[%c0_11, %c0_12] : memref<32x16xf32, #tpu.memory_space<vmem>>, vector<32x16xf32>
      tpu.vector_store %arg9[%c0_11, %c0_12], %12 {strides = array<i32>} : memref<32x16xf32, #tpu.memory_space<vmem>>, vector<32x16xf32>,
    } else {
    }
    %c0 = arith.constant 0 : index
    %c0_1 = arith.constant 0 : index
    %3 = vector.load %arg9[%c0, %c0_1] : memref<32x16xf32, #tpu.memory_space<vmem>>, vector<32x16xf32>
    %c0_2 = arith.constant 0 : index
    %c0_3 = arith.constant 0 : index
    %4 = vector.load %arg2[%c0_2, %c0_3] : memref<32x128xbf16, #tpu.memory_space<vmem>>, vector<32x128xbf16>
    %c0_4 = arith.constant 0 : index
    %c0_5 = arith.constant 0 : index
    %5 = vector.load %arg3[%c0_4, %c0_5] : memref<128x16xbf16, #tpu.memory_space<vmem>>, vector<128x16xbf16>
    %cst = arith.constant dense<0.000000e+00> : vector<32x16xf32>
    %6 = tpu.matmul %4, %5, %cst {dimension_numbers = #tpu.dot_dimension_numbers<[1], [0], [0], [1], [0, 0, 1, 1], [], []>} : vector<32x128xbf16>, vector<128x16xbf16>, vector<32x16xf32> -> vector<32x16xf32>
    %7 = arith.addf %3, %6 : vector<32x16xf32>
    %c0_6 = arith.constant 0 : index
    %c0_7 = arith.constant 0 : index
    %8 = vector.load %arg9[%c0_6, %c0_7] : memref<32x16xf32, #tpu.memory_space<vmem>>, vector<32x16xf32>
    tpu.vector_store %arg9[%c0_6, %c0_7], %7 {strides = array<i32>} : memref<32x16xf32, #tpu.memory_space<vmem>>, vector<32x16xf32>,
    %c0_i32_8 = arith.constant 0 : i32
    %9 = arith.cmpi eq, %arg1, %c0_i32_8 : i32
    %10 = arith.extui %9 : i1 to i32
    %c0_i32_9 = arith.constant 0 : i32
    %11 = arith.cmpi ne, %10, %c0_i32_9 : i32
    scf.if %11 {
      %c0_10 = arith.constant 0 : index
      %c0_11 = arith.constant 0 : index
      %12 = vector.load %arg9[%c0_10, %c0_11] : memref<32x16xf32, #tpu.memory_space<vmem>>, vector<32x16xf32>
      %13 = arith.truncf %12 : vector<32x16xf32> to vector<32x16xbf16>
      %c0_12 = arith.constant 0 : index
      %c0_13 = arith.constant 0 : index
      %14 = vector.load %arg4[%c0_12, %c0_13] : memref<32x16xbf16, #tpu.memory_space<vmem>>, vector<32x16xbf16>
      %c0_14 = arith.constant 0 : index
      %c0_15 = arith.constant 0 : index
      %15 = vector.load %arg5[%c0_14, %c0_15] : memref<16x128xbf16, #tpu.memory_space<vmem>>, vector<16x128xbf16>
      %cst_16 = arith.constant dense<0.000000e+00> : vector<32x128xf32>
      %16 = tpu.matmul %14, %15, %cst_16 {dimension_numbers = #tpu.dot_dimension_numbers<[1], [0], [0], [1], [0, 0, 1, 1], [], []>} : vector<32x16xbf16>, vector<16x128xbf16>, vector<32x128xf32> -> vector<32x128xf32>
      %c0_17 = arith.constant 0 : index
      %c0_18 = arith.constant 0 : index
      %17 = vector.load %arg6[%c0_17, %c0_18] : memref<16x128xbf16, #tpu.memory_space<vmem>>, vector<16x128xbf16>
      %cst_19 = arith.constant dense<0.000000e+00> : vector<32x128xf32>
      %18 = tpu.matmul %13, %17, %cst_19 {dimension_numbers = #tpu.dot_dimension_numbers<[1], [0], [0], [1], [0, 0, 1, 1], [], []>} : vector<32x16xbf16>, vector<16x128xbf16>, vector<32x128xf32> -> vector<32x128xf32>
      %19 = arith.addf %16, %18 : vector<32x128xf32>
      %c0_20 = arith.constant 0 : index
      %c0_21 = arith.constant 0 : index
      %20 = vector.load %arg7[%c0_20, %c0_21] : memref<1x128xf32, #tpu.memory_space<vmem>>, vector<1x128xf32>
      %21 = vector.broadcast %20 : vector<1x128xf32> to vector<32x128xf32>
      %22 = arith.addf %19, %21 : vector<32x128xf32>
      %cst_22 = arith.constant 0.000000e+00 : f32
      %23 = vector.broadcast %cst_22 : f32 to vector<32x128xf32>
      %24 = arith.maximumf %22, %23 : vector<32x128xf32>
      %c0_23 = arith.constant 0 : index
      %c0_24 = arith.constant 0 : index
      %25 = vector.load %arg8[%c0_23, %c0_24] : memref<32x128xf32, #tpu.memory_space<vmem>>, vector<32x128xf32>
      tpu.vector_store %arg8[%c0_23, %c0_24], %24 {strides = array<i32>} : memref<32x128xf32, #tpu.memory_space<vmem>>, vector<32x128xf32>,
    } else {
    }
    return
  }
  func.func @transform_0(%arg0: i32, %arg1: i32) -> (i32, i32) {
    %c0_i32 = arith.constant 0 : i32
    return %arg0, %arg1 : i32, i32
  }
  func.func @transform_1(%arg0: i32, %arg1: i32) -> (i32, i32) {
    %c0_i32 = arith.constant 0 : i32
    %c0_i32_0 = arith.constant 0 : i32
    return %arg1, %c0_i32 : i32, i32
  }
  func.func @transform_2(%arg0: i32, %arg1: i32) -> (i32, i32) {
    %c0_i32 = arith.constant 0 : i32
    %c0_i32_0 = arith.constant 0 : i32
    return %arg0, %c0_i32 : i32, i32
  }
  func.func @transform_3(%arg0: i32, %arg1: i32) -> (i32, i32) {
    %c0_i32 = arith.constant 0 : i32
    %c0_i32_0 = arith.constant 0 : i32
    %c0_i32_1 = arith.constant 0 : i32
    return %c0_i32, %c0_i32_0 : i32, i32
  }
  func.func @transform_4(%arg0: i32, %arg1: i32) -> (i32, i32) {
    %c0_i32 = arith.constant 0 : i32
    %c0_i32_0 = arith.constant 0 : i32
    %c0_i32_1 = arith.constant 0 : i32
    return %c0_i32, %c0_i32_0 : i32, i32
  }
  func.func @transform_5(%arg0: i32, %arg1: i32) -> (i32, i32) {
    %c0_i32 = arith.constant 0 : i32
    %c0_i32_0 = arith.constant 0 : i32
    %c0_i32_1 = arith.constant 0 : i32
    return %c0_i32, %c0_i32_0 : i32, i32
  }
  func.func @transform_6(%arg0: i32, %arg1: i32) -> (i32, i32) {
    %c0_i32 = arith.constant 0 : i32
    %c0_i32_0 = arith.constant 0 : i32
    return %arg0, %c0_i32 : i32, i32
  }
}

</mosaic_0001>

<llo_original>
// kernel: tpu_custom_call.1
$region0: #{tpu_custom_call.1}
  #allocation0 [shape = 'u32[]', space=smem, size = 0x4, offset = 0x4, fixed_abs, tag = 'smem constant byte address 0x4 - core index']
  #allocation1 [shape = 'u32[72,128]{1,0:T(1,128)}', space=vmem, size = 0x9000, scoped, tag = 'internal scratch']
  #allocation2 [shape = 'f32[32,16]{1,0:T(8,128)}', space=vmem, size = 0x4000, scoped, tag = 'scratch operand']
  %s0 = inlined_call_operand.vmem [shape: bf16[32,128], index: 0, kind: input, shape index: {}]
  %s1 = inlined_call_operand.vmem [shape: bf16[128,16], index: 1, kind: input, shape index: {}]
  %s2 = inlined_call_operand.vmem [shape: bf16[32,16], index: 2, kind: input, shape index: {}]
  %s3 = inlined_call_operand.vmem [shape: bf16[16,128], index: 3, kind: input, shape index: {}]
  %s4 = inlined_call_operand.vmem [shape: bf16[16,128], index: 4, kind: input, shape index: {}]
  %s5 = inlined_call_operand.vmem [shape: f32[1,128], index: 5, kind: input, shape index: {}]
  %s6 = inlined_call_operand.hbm [shape: f32[32,128], index: 6, kind: output, shape index: {}]
  %s7 = sld [smem:[#allocation0]]
  $region42: #{tpu_custom_call.1} parent=0
    _
  %s9 = ssub.s32 1, %s7
  %s10 = scalar_select 0, %s9, %s7
  $region1: #{tpu_custom_call.1} parent=0
    #allocation3 [shape = 'u8[16384]{0}', space=vmem, size = 0x4000, scoped, tag = 'output window, operand 0, single buffered']
    #allocation4 [shape = 's32[1]{0}', space=sflag, size = 0x4, scoped, tag = 'scoped memory for tpu_custom_call.1']
    %11 = vsyncpa [#allocation4], 0
    // Predicated region
    $region2: #{tpu_custom_call.1} parent=1 // pred_check
      _
    $region3: #{tpu_custom_call.1} parent=1 // pred_check_branch
      %13 = sbr.rel (0) target = $region5
    $region4: #{tpu_custom_call.1} parent=1 // pred_region
      _
    $region5: #{tpu_custom_call.1} parent=1 // pred_fallthru
      _
    // Predicated region
    $region6: #{tpu_custom_call.1} parent=1 // pred_check
      _
    $region7: #{tpu_custom_call.1} parent=1 // pred_check_branch
      %15 = sbr.rel (0) target = $region9
    $region8: #{tpu_custom_call.1} parent=1 // pred_region
      _
    $region9: #{tpu_custom_call.1} parent=1 // pred_fallthru
      _
    // Predicated region
    $region10: #{tpu_custom_call.1} parent=1 // pred_check
      _
    $region11: #{tpu_custom_call.1} parent=1 // pred_check_branch
      %17 = sbr.rel (0) target = $region13
    $region12: #{tpu_custom_call.1} parent=1 // pred_region
      _
    $region13: #{tpu_custom_call.1} parent=1 // pred_fallthru
      _
    // Predicated region
    $region14: #{tpu_custom_call.1} parent=1 // pred_check
      _
    $region15: #{tpu_custom_call.1} parent=1 // pred_check_branch
      %19 = sbr.rel (0) target = $region17
    $region16: #{tpu_custom_call.1} parent=1 // pred_region
      _
    $region17: #{tpu_custom_call.1} parent=1 // pred_fallthru
      _
    // Predicated region
    $region18: #{tpu_custom_call.1} parent=1 // pred_check
      _
    $region19: #{tpu_custom_call.1} parent=1 // pred_check_branch
      %21 = sbr.rel (0) target = $region21
    $region20: #{tpu_custom_call.1} parent=1 // pred_region
      _
    $region21: #{tpu_custom_call.1} parent=1 // pred_fallthru
      _
    // Predicated region
    $region22: #{tpu_custom_call.1} parent=1 // pred_check
      _
    $region23: #{tpu_custom_call.1} parent=1 // pred_check_branch
      %23 = sbr.rel (0) target = $region25
    $region24: #{tpu_custom_call.1} parent=1 // pred_region
      _
    $region25: #{tpu_custom_call.1} parent=1 // pred_fallthru
      _
    %p25 = scmp.eq.s32.totalorder 0, 0
    // Predicated region
    $region26: #{tpu_custom_call.1} parent=1 // pred_check
      %p26 = pneg %p25
    $region27: #{tpu_custom_call.1} parent=1 // pred_check_branch
      %28 = sbr.rel (%p26) target = $region29
    $region28: #{tpu_custom_call.1} parent=1 // pred_region
      %vm29 = vcmask 130048
      %30 = vst.msk [vmem:[#allocation2] sm:$0xff] %vm29, 0.0
      %31 = vst.msk [vmem:[#allocation2 + $0x8] sm:$0xff] %vm29, 0.0
      %32 = vst.msk [vmem:[#allocation2 + $0x10] sm:$0xff] %vm29, 0.0
      %33 = vst.msk [vmem:[#allocation2 + $0x18] sm:$0xff] %vm29, 0.0
    $region29: #{tpu_custom_call.1} parent=1 // pred_fallthru
      _
    %v34 = vld [vmem:[#allocation2] sm:$0xff]
    %v35 = vld [vmem:[#allocation2 + $0x8] sm:$0xff]
    %v36 = vld [vmem:[#allocation2 + $0x10] sm:$0xff]
    %v37 = vld [vmem:[#allocation2 + $0x18] sm:$0xff]
    %v38 = vld [vmem:[%s0] sm:$0xf]
    %v39 = vld [vmem:[%s0 + $0x4] sm:$0xf]
    %v40 = vld [vmem:[%s0 + $0x8] sm:$0xf]
    %v41 = vld [vmem:[%s0 + $0xc] sm:$0xf]
    %v42 = vld [vmem:[%s1] sm:$0xf]
    %v43 = vld [vmem:[%s1 + $0x4] sm:$0xf]
    %v44 = vld [vmem:[%s1 + $0x8] sm:$0xf]
    %v45 = vld [vmem:[%s1 + $0xc] sm:$0xf]
    %v46 = vld [vmem:[%s1 + $0x10] sm:$0xf]
    %v47 = vld [vmem:[%s1 + $0x14] sm:$0xf]
    %v48 = vld [vmem:[%s1 + $0x18] sm:$0xf]
    %v49 = vld [vmem:[%s1 + $0x1c] sm:$0xf]
    %v50 = vld [vmem:[%s1 + $0x20] sm:$0xf]
    %v51 = vld [vmem:[%s1 + $0x24] sm:$0xf]
    %v52 = vld [vmem:[%s1 + $0x28] sm:$0xf]
    %v53 = vld [vmem:[%s1 + $0x2c] sm:$0xf]
    %v54 = vld [vmem:[%s1 + $0x30] sm:$0xf]
    %v55 = vld [vmem:[%s1 + $0x34] sm:$0xf]
    %v56 = vld [vmem:[%s1 + $0x38] sm:$0xf]
    %v57 = vld [vmem:[%s1 + $0x3c] sm:$0xf]
    %v62 = vunpack.c.l.b16 %v38
    %v63 = vunpack.c.l.b16 %v39
    %v64 = vunpack.c.l.b16 %v40
    %v65 = vunpack.c.l.b16 %v41
    %v66 = vpack.c.b16 %v63, %v62
    %v67 = vpack.c.b16 %v65, %v64
    %v86 = vunpack.c.l.b16 %v42
    %v87 = vunpack.c.l.b16 %v43
    %v88 = vunpack.c.l.b16 %v44
    %v89 = vunpack.c.l.b16 %v45
    %v90 = vunpack.c.l.b16 %v46
    %v91 = vunpack.c.l.b16 %v47
    %v92 = vunpack.c.l.b16 %v48
    %v93 = vunpack.c.l.b16 %v49
    %v94 = vunpack.c.l.b16 %v50
    %v95 = vunpack.c.l.b16 %v51
    %v96 = vunpack.c.l.b16 %v52
    %v97 = vunpack.c.l.b16 %v53
    %v98 = vunpack.c.l.b16 %v54
    %v99 = vunpack.c.l.b16 %v55
    %v100 = vunpack.c.l.b16 %v56
    %v101 = vunpack.c.l.b16 %v57
    %v102 = vpack.c.b16 %v87, %v86
    %v103 = vpack.c.b16 %v89, %v88
    %v104 = vpack.c.b16 %v91, %v90
    %v105 = vpack.c.b16 %v93, %v92
    %v106 = vpack.c.b16 %v95, %v94
    %v107 = vpack.c.b16 %v97, %v96
    %v108 = vpack.c.b16 %v99, %v98
    %v109 = vpack.c.b16 %v101, %v100
    %118 = vmatpush.bf16.msra.mxu0 %v109
    %119 = vmatpush.bf16.msra.mxu0 %v108
    %120 = vmatpush.bf16.msra.mxu0 %v107
    %121 = vmatpush.bf16.msra.mxu0 %v106
    %122 = vmatpush.bf16.msra.mxu0 %v105
    %123 = vmatpush.bf16.msra.mxu0 %v104
    %124 = vmatpush.bf16.msra.mxu0 %v103
    %125 = vmatpush.bf16.msra.mxu0 %v102
    %126 = vmatmul.bf16.gmra.mxu0 %v66
    %v127 = vpop.f32.mrf.mxu0
    %v128 = vadd.f32 0.0, %v127
    %v129 = vpop.f32.mrf.mxu0
    %v130 = vadd.f32 0.0, %v129
    %131 = vmatmul.bf16.gmra.mxu0 %v67
    %v132 = vpop.f32.mrf.mxu0
    %v133 = vadd.f32 0.0, %v132
    %v134 = vpop.f32.mrf.mxu0
    %v135 = vadd.f32 0.0, %v134
    %136 = vdwg.mxu0
    %v137 = vadd.f32 %v34, %v128
    %v138 = vadd.f32 %v35, %v130
    %v139 = vadd.f32 %v36, %v133
    %v140 = vadd.f32 %v37, %v135
    %vm141 = vcmask 130048
    %142 = vst.msk [vmem:[#allocation2] sm:$0xff] %vm141, %v137
    %143 = vst.msk [vmem:[#allocation2 + $0x8] sm:$0xff] %vm141, %v138
    %144 = vst.msk [vmem:[#allocation2 + $0x10] sm:$0xff] %vm141, %v139
    %145 = vst.msk [vmem:[#allocation2 + $0x18] sm:$0xff] %vm141, %v140
    // Predicated region
    $region30: #{tpu_custom_call.1} parent=1 // pred_check
      %p146 = pneg %p25
    $region31: #{tpu_custom_call.1} parent=1 // pred_check_branch
      %148 = sbr.rel (%p146) target = $region33
    $region32: #{tpu_custom_call.1} parent=1 // pred_region
      %v149 = vld [vmem:[#allocation2] sm:$0xff]
      %v150 = vld [vmem:[#allocation2 + $0x8] sm:$0xff]
      %v151 = vld [vmem:[#allocation2 + $0x10] sm:$0xff]
      %v152 = vld [vmem:[#allocation2 + $0x18] sm:$0xff]
      %v153 = vpack.c.bf16 %v150, %v149
      %v154 = vpack.c.bf16 %v152, %v151
      %v155 = vld [vmem:[%s2] sm:$0xf]
      %v156 = vld [vmem:[%s2 + $0x4] sm:$0xf]
      %v157 = vld [vmem:[%s2 + $0x8] sm:$0xf]
      %v158 = vld [vmem:[%s2 + $0xc] sm:$0xf]
      %v159 = vld [vmem:[%s3] sm:$0xf]
      %v160 = vld [vmem:[%s3 + $0x4] sm:$0xf]
      %v161 = vld [vmem:[%s4] sm:$0xf]
      %v162 = vld [vmem:[%s4 + $0x4] sm:$0xf]
      %v165 = vunpack.c.l.b16 %v161
      %v166 = vunpack.c.l.b16 %v162
      %v167 = vpack.c.b16 %v166, %v165
      %v170 = vsel %vm141, %v153, 0
      %v173 = vsel %vm141, %v154, 0
      %175 = vmatpush.bf16.msra.mxu0 0
      %176 = vmatpush.bf16.msra.mxu0 0
      %177 = vmatpush.bf16.msra.mxu0 0
      %178 = vmatpush.bf16.msra.mxu0 0
      %179 = vmatpush.bf16.msra.mxu0 0
      %180 = vmatpush.bf16.msra.mxu0 0
      %181 = vmatpush.bf16.msra.mxu0 0
      %182 = vmatpush.bf16.msra.mxu0 %v167
      %183 = vmatmul.bf16.gmra.mxu0 %v170
      %v184 = vpop.f32.mrf.mxu0
      %v185 = vadd.f32 0.0, %v184
      %v186 = vpop.f32.mrf.mxu0
      %v187 = vadd.f32 0.0, %v186
      %188 = vmatmul.bf16.gmra.mxu0 %v173
      %v189 = vpop.f32.mrf.mxu0
      %v190 = vadd.f32 0.0, %v189
      %v191 = vpop.f32.mrf.mxu0
      %v192 = vadd.f32 0.0, %v191
      %193 = vdwg.mxu0
      %v198 = vunpack.c.l.b16 %v155
      %v199 = vunpack.c.l.b16 %v156
      %v200 = vunpack.c.l.b16 %v157
      %v201 = vunpack.c.l.b16 %v158
      %v202 = vpack.c.b16 %v199, %v198
      %v203 = vpack.c.b16 %v201, %v200
      %v206 = vunpack.c.l.b16 %v159
      %v207 = vunpack.c.l.b16 %v160
      %v208 = vpack.c.b16 %v207, %v206
      %v211 = vsel %vm141, %v202, 0
      %v214 = vsel %vm141, %v203, 0
      %216 = vmatpush.bf16.msra.mxu0 0
      %217 = vmatpush.bf16.msra.mxu0 0
      %218 = vmatpush.bf16.msra.mxu0 0
      %219 = vmatpush.bf16.msra.mxu0 0
      %220 = vmatpush.bf16.msra.mxu0 0
      %221 = vmatpush.bf16.msra.mxu0 0
      %222 = vmatpush.bf16.msra.mxu0 0
      %223 = vmatpush.bf16.msra.mxu0 %v208
      %224 = vmatmul.bf16.gmra.mxu0 %v211
      %v225 = vpop.f32.mrf.mxu0
      %v226 = vadd.f32 %v185, %v225
      %v227 = vpop.f32.mrf.mxu0
      %v228 = vadd.f32 %v187, %v227
      %229 = vmatmul.bf16.gmra.mxu0 %v214
      %v230 = vpop.f32.mrf.mxu0
      %v231 = vadd.f32 %v190, %v230
      %v232 = vpop.f32.mrf.mxu0
      %v233 = vadd.f32 %v192, %v232
      %234 = vdwg.mxu0
      %v235 = vld [vmem:[%s5] sm:$0x1]
      %v237 = vperm.slane %v235, 0
      %v239 = vadd.f32 %v226, %v237
      %v240 = vadd.f32 %v228, %v237
      %v241 = vadd.f32 %v231, %v237
      %v242 = vadd.f32 %v233, %v237
      %v243 = vmax.f32 %v239, 0.0
      %v244 = vmax.f32 %v240, 0.0
      %v245 = vmax.f32 %v241, 0.0
      %v246 = vmax.f32 %v242, 0.0
      %247 = vst [vmem:[#allocation3] sm:$0xff] %v243
      %248 = vst [vmem:[#allocation3 + $0x8] sm:$0xff] %v244
      %249 = vst [vmem:[#allocation3 + $0x10] sm:$0xff] %v245
      %250 = vst [vmem:[#allocation3 + $0x18] sm:$0xff] %v246
    $region33: #{tpu_custom_call.1} parent=1 // pred_fallthru
      _
    // Predicated region
    $region34: #{tpu_custom_call.1} parent=1 // pred_check
      _
    $region35: #{tpu_custom_call.1} parent=1 // pred_check_branch
      %252 = sbr.rel (0) target = $region37
    $region36: #{tpu_custom_call.1} parent=1 // pred_region
      %254 = vsyncadd [#allocation4], 0
      %s255 = sshll.u32 [#allocation3], 4
      %s256 = int_to_ptr.vmem [resolvable:$true] %s255
      %s257 = sshll.u32 %s6, 4
      %s258 = int_to_ptr.hbm [resolvable:$true] %s257
      %263 = dma.vmem_to_hbm [thread:$0]  %s256, 512, %s258, [#allocation4], 128, 128, 8
    $region37: #{tpu_custom_call.1} parent=1 // pred_fallthru
      _
    // Predicated region
    $region38: #{tpu_custom_call.1} parent=1 // pred_check
      _
    $region39: #{tpu_custom_call.1} parent=1 // pred_check_branch
      %265 = sbr.rel (0) target = $region41
    $region40: #{tpu_custom_call.1} parent=1 // pred_region
      %267 = dma.done [#allocation4], 512
    $region41: #{tpu_custom_call.1} parent=1 // pred_fallthru
      _
    %268 = vsyncpa [#allocation4], 1

</llo_original>
